<compile_context>
chip_gen: v6e
topology: v6e:2x2x1
jax: 0.10.0
libtpu: 0.0.40
codegen_flags: <defaults>
</compile_context>

<pallas_src>
import jax
import jax.numpy as jnp
from jax.experimental import pallas as pl
from jax.experimental.pallas import tpu as pltpu

_EPS = 1e-7
_LANES = 128
_MIN_ROWS = 32   # minimum sublane extent; multiple of int8(32)/bf16(16)/f32(8) packing


def _round_up(x: int, m: int) -> int:
    return ((x + m - 1) // m) * m


def _cdiv(a: int, b: int) -> int:
    return -(-a // b)


def _make_kernel(C, S, spg, rows, need_mask, in_dtype):
    def kernel(yhat_ref, tgt_ref, out_ref):
        # yhat_ref: (1, C, S, 128) native dtype
        # tgt_ref:  (1, 1, S, 128) int8 / int32
        # out_ref:  (1, 1, 8, 128) f32, resident across the reduction axis
        s = pl.program_id(2)

        @pl.when(s == 0)
        def _():
            out_ref[...] = jnp.zeros_like(out_ref)

        tgt = tgt_ref[0, 0].astype(jnp.int32)                    # (S, 128)
        one_v = jnp.asarray(1.0 + _EPS, dtype=in_dtype)
        eps_v = jnp.asarray(_EPS, dtype=in_dtype)

        sq = None
        for c in range(C):                                       # small static C
            y_c = yhat_ref[0, c]                                 # (S, 128)
            # Fused one-hot + eps: one select + one subtract per channel, kept
            # in the input dtype (packed bf16 on v6e/v7x); widen to f32 only
            # for the square/accumulate.
            d = (y_c - jnp.where(tgt == c, one_v, eps_v)).astype(jnp.float32)
            sq = d * d if sq is None else sq + d * d

        if need_mask:
            # Zero contributions from rows past the real array (tile overhang
            # reads unspecified data).  One compare + one select per step.
            g = pl.program_id(1)
            row0 = (g * spg + s) * S
            ridx = row0 + jax.lax.broadcasted_iota(jnp.int32, (S, _LANES), 0)
            sq = jnp.where(ridx < rows, sq, 0.0)

        # Fold the (S, 128) partial into a single (8, 128) vreg and accumulate
        # into the resident output block (no big scratch, tiny VMEM st traffic).
        out_ref[0, 0] += jnp.sum(sq.reshape(S // 8, 8, _LANES), axis=0)

    return kernel


def mse_weighted_loss(yhat: jax.Array, target: jax.Array, *,
                      target_block_bytes: int = 2 * 1024 * 1024,
                      block_rows=None) -> jax.Array:
    """MSEWeighted.forward with all optional flags at their defaults.

    yhat:   (B, C, H, W) float (f32 / bf16);  target: (B, H, W) integer map.
    Returns the scalar float32 loss.
    """
    B, C, H, W = yhat.shape
    assert target.shape == (B, H, W), (target.shape, yhat.shape)
    in_dtype = yhat.dtype
    itemsize = jnp.dtype(in_dtype).itemsize
    HW = H * W

    # ---- spatial layout: (B, C, rows, 128) so spatial fills sublane + lane --
    # Pad the flattened spatial axis only when H*W is not a multiple of 128 (or
    # smaller than one 32x128 tile).  Predictions are padded with _EPS and
    # targets with -1 so padded positions contribute exactly (eps - eps)^2 == 0.
    # For the common H*W % 128 == 0 case there is NO extra HBM copy of yhat.
    HW_pad = max(_round_up(HW, _LANES), _MIN_ROWS * _LANES)
    tgt_dtype = jnp.int8 if C <= 127 else jnp.int32
    yhat_r = yhat.reshape(B, C, HW)
    tgt_r = target.astype(tgt_dtype).reshape(B, 1, HW)
    if HW_pad != HW:
        pad = HW_pad - HW
        yhat_r = jnp.pad(yhat_r, ((0, 0), (0, 0), (0, pad)), constant_values=_EPS)
        tgt_r = jnp.pad(tgt_r, ((0, 0), (0, 0), (0, pad)), constant_values=-1)
    rows = HW_pad // _LANES
    yhat_r = yhat_r.reshape(B, C, rows, _LANES)
    tgt_r = tgt_r.reshape(B, 1, rows, _LANES)

    # ---- tile size: rows-per-block scaled with C -> ~2 MiB yhat block --------
    lane_bytes = C * _LANES * itemsize
    if block_rows is not None:
        S = _round_up(int(block_rows), _MIN_ROWS)
    else:
        S = target_block_bytes // lane_bytes
    S = min(S, (rows // _MIN_ROWS) * _MIN_ROWS, 2048)
    S = max(_MIN_ROWS, (S // _MIN_ROWS) * _MIN_ROWS)

    n_t = _cdiv(rows, S)                       # row tiles per batch element
    # v7x megacore: B (and G) are the parallel axes.  If B is odd (e.g. B == 1)
    # split the spatial reduction two ways so both TensorCores have work.
    G = 2 if (B % 2 == 1 and n_t >= 2) else 1
    spg = _cdiv(n_t, G)                        # sequential steps per (b, g)
    need_mask = (G * spg * S) != rows          # any tile overhangs the array?

    kernel = _make_kernel(C, S, spg, rows, need_mask, in_dtype)

    def row_tile(g, s):
        # Clamp overhang tiles to the last valid block; the in-kernel row mask
        # zeroes their contribution.
        return jnp.minimum(g * spg + s, n_t - 1)

    in_specs = [
        pl.BlockSpec((1, C, S, _LANES), lambda b, g, s: (b, 0, row_tile(g, s), 0)),
        pl.BlockSpec((1, 1, S, _LANES), lambda b, g, s: (b, 0, row_tile(g, s), 0)),
    ]
    out_specs = pl.BlockSpec((1, 1, 8, _LANES), lambda b, g, s: (b, g, 0, 0))

    # VMEM budget: double-buffered inputs + elementwise temporaries + headroom.
    # Stays well under v7x's 64 MiB physical VMEM while raising v5e's default.
    tgt_itemsize = jnp.dtype(tgt_dtype).itemsize
    vmem_need = (2 * (C * S * _LANES * itemsize + S * _LANES * tgt_itemsize)
                 + 8 * S * _LANES * 4 + (2 << 20))
    vmem_limit = int(min(max(vmem_need, 16 * 1024 * 1024), 40 * 1024 * 1024))

    cost = pl.CostEstimate(
        flops=5 * B * C * HW,
        transcendentals=0,
        bytes_accessed=(B * C * rows * _LANES * itemsize
                        + B * rows * _LANES * tgt_itemsize
                        + B * G * 8 * _LANES * 4),
    )

    partials = pl.pallas_call(
        kernel,
        out_shape=jax.ShapeDtypeStruct((B, G, 8, _LANES), jnp.float32),
        grid_spec=pltpu.PrefetchScalarGridSpec(
            num_scalar_prefetch=0,
            grid=(B, G, spg),
            in_specs=in_specs,
            out_specs=out_specs,
        ),
        compiler_params=pltpu.CompilerParams(
            dimension_semantics=("parallel", "parallel", "arbitrary"),
            vmem_limit_bytes=vmem_limit,
        ),
        cost_estimate=cost,
    )(yhat_r, tgt_r)

    # Global mean.  (f32 divisor loses exactness only above 2^24 elements,
    # ~1e-7 relative on the normalizer -- negligible.)
    return jnp.sum(partials) / jnp.float32(B * C * H * W)


def _reference_loss(yhat, target):
    C = yhat.shape[1]
    one_hot = jax.nn.one_hot(target, C, axis=1, dtype=jnp.float32) + _EPS
    mse = (yhat.astype(jnp.float32) - one_hot) ** 2
    mse = jnp.mean(mse, axis=1)     # mean over channels -> (B, H, W)
    return jnp.mean(mse)            # global mean -> scalar


if __name__ == "__main__":
    key = jax.random.PRNGKey(0)
    ks = jax.random.split(key, 8)

    # Case 1: f32, tiny spatial (padded with eps/-1), single reduction step.
    B, C, H, W = 2, 4, 16, 16
    yhat = jax.random.normal(ks[0], (B, C, H, W), dtype=jnp.float32)
    tgt = jax.random.randint(ks[1], (B, H, W), 0, C, dtype=jnp.int32)
    out = jax.block_until_ready(mse_weighted_loss(yhat, tgt))
    ref = _reference_loss(yhat, tgt)
    assert jnp.allclose(out, ref, rtol=1e-5, atol=1e-6), (out, ref)

    # Case 2: bf16, H*W multiple of 128 (no pad copy), odd batch -> G=2 spatial
    # split (both v7x cores), ragged row tiling -> clamped index_map + row mask.
    B2, C2, H2, W2 = 3, 5, 96, 96
    yhat2 = jax.random.normal(ks[2], (B2, C2, H2, W2), dtype=jnp.bfloat16)
    tgt2 = jax.random.randint(ks[3], (B2, H2, W2), 0, C2, dtype=jnp.int32)
    out2 = jax.block_until_ready(mse_weighted_loss(yhat2, tgt2))
    ref2 = _reference_loss(yhat2, tgt2)
    assert jnp.allclose(out2, ref2, rtol=1e-3, atol=1e-4), (out2, ref2)

    # Case 3: f32, B=1 with a forced small row tile -> multi-step sequential
    # accumulation per split plus both parallel splits active.
    B3, C3, H3, W3 = 1, 4, 96, 96
    yhat3 = jax.random.normal(ks[4], (B3, C3, H3, W3), dtype=jnp.float32)
    tgt3 = jax.random.randint(ks[5], (B3, H3, W3), 0, C3, dtype=jnp.int32)
    out3 = jax.block_until_ready(mse_weighted_loss(yhat3, tgt3, block_rows=32))
    ref3 = _reference_loss(yhat3, tgt3)
    assert jnp.allclose(out3, ref3, rtol=1e-5, atol=1e-6), (out3, ref3)

    # Case 4: f32 with H*W not a multiple of 128 -> eps/-1 lane-padding path.
    B4, C4, H4, W4 = 2, 6, 20, 20
    yhat4 = jax.random.normal(ks[6], (B4, C4, H4, W4), dtype=jnp.float32)
    tgt4 = jax.random.randint(ks[7], (B4, H4, W4), 0, C4, dtype=jnp.int32)
    out4 = jax.block_until_ready(mse_weighted_loss(yhat4, tgt4))
    ref4 = _reference_loss(yhat4, tgt4)
    assert jnp.allclose(out4, ref4, rtol=1e-5, atol=1e-6), (out4, ref4)

    # TODO(synk): optional branches (apply_sd / apply_ls / apply_svls /
    # apply_mask / class_weights / edge_weight) are disabled by default in the
    # module's __init__ and are not implemented here; likewise the float32
    # regression-target branch (target already dense (B,1,H,W)).
    print("KERNEL_OK")
</pallas_src>

<mosaic_0001>
module attributes {stable_mosaic.version = 11 : i64} {
  func.func @kernel(%arg0: i32, %arg1: i32, %arg2: i32, %arg3: memref<1x4x32x128xf32, #tpu.memory_space<vmem>>, %arg4: memref<1x1x32x128xi8, #tpu.memory_space<vmem>>, %arg5: memref<1x1x8x128xf32, #tpu.memory_space<vmem>>) attributes {dimension_semantics = [#tpu.dimension_semantics<parallel>, #tpu.dimension_semantics<parallel>, #tpu.dimension_semantics<arbitrary>], iteration_bounds = array<i64: 2, 1, 1>, scalar_prefetch = 0 : i64, scratch_operands = 0 : i64, tpu.core_type = #tpu.core_type<tc>, window_params = [{transform_indices = @transform_0, window_bounds = array<i64: 1, 4, 32, 128>}, {transform_indices = @transform_1, window_bounds = array<i64: 1, 1, 32, 128>}, {transform_indices = @transform_2, window_bounds = array<i64: 1, 1, 8, 128>}]} {
    %c0_i32 = arith.constant 0 : i32
    %0 = arith.cmpi eq, %arg2, %c0_i32 : i32
    %1 = arith.extui %0 : i1 to i32
    %c0_i32_0 = arith.constant 0 : i32
    %2 = arith.cmpi ne, %1, %c0_i32_0 : i32
    scf.if %2 {
      %cst_34 = arith.constant 0.000000e+00 : f32
      %53 = vector.broadcast %cst_34 : f32 to vector<1x1x8x128xf32>
      %c0_35 = arith.constant 0 : index
      %c0_36 = arith.constant 0 : index
      %c0_37 = arith.constant 0 : index
      %c0_38 = arith.constant 0 : index
      %54 = vector.load %arg5[%c0_35, %c0_36, %c0_37, %c0_38] : memref<1x1x8x128xf32, #tpu.memory_space<vmem>>, vector<1x1x8x128xf32>
      tpu.vector_store %arg5[%c0_35, %c0_36, %c0_37, %c0_38], %53 {strides = array<i32>} : memref<1x1x8x128xf32, #tpu.memory_space<vmem>>, vector<1x1x8x128xf32>,
    } else {
    }
    %c0 = arith.constant 0 : index
    %c0_1 = arith.constant 0 : index
    %c0_2 = arith.constant 0 : index
    %c0_3 = arith.constant 0 : index
    %3 = vector.load %arg4[%c0, %c0_1, %c0_2, %c0_3] : memref<1x1x32x128xi8, #tpu.memory_space<vmem>>, vector<1x1x32x128xi8>
    %4 = vector.shape_cast %3 : vector<1x1x32x128xi8> to vector<32x128xi8>
    %5 = arith.extsi %4 : vector<32x128xi8> to vector<32x128xi32>
    %c0_4 = arith.constant 0 : index
    %c0_5 = arith.constant 0 : index
    %c0_6 = arith.constant 0 : index
    %c0_7 = arith.constant 0 : index
    %6 = vector.load %arg3[%c0_4, %c0_5, %c0_6, %c0_7] : memref<1x4x32x128xf32, #tpu.memory_space<vmem>>, vector<1x1x32x128xf32>
    %7 = vector.shape_cast %6 : vector<1x1x32x128xf32> to vector<32x128xf32>
    %c0_i32_8 = arith.constant 0 : i32
    %8 = vector.broadcast %c0_i32_8 : i32 to vector<32x128xi32>
    %9 = arith.cmpi eq, %5, %8 : vector<32x128xi32>
    %cst = arith.constant 1.00000012 : f32
    %cst_9 = arith.constant 1.000000e-07 : f32
    %10 = vector.broadcast %cst : f32 to vector<32x128xf32>
    %11 = vector.broadcast %cst_9 : f32 to vector<32x128xf32>
    %12 = arith.select %9, %10, %11 : vector<32x128xi1>, vector<32x128xf32>
    %13 = arith.subf %7, %12 : vector<32x128xf32>
    %14 = arith.mulf %13, %13 : vector<32x128xf32>
    %c0_10 = arith.constant 0 : index
    %c1 = arith.constant 1 : index
    %c0_11 = arith.constant 0 : index
    %c0_12 = arith.constant 0 : index
    %15 = vector.load %arg3[%c0_10, %c1, %c0_11, %c0_12] : memref<1x4x32x128xf32, #tpu.memory_space<vmem>>, vector<1x1x32x128xf32>
    %16 = vector.shape_cast %15 : vector<1x1x32x128xf32> to vector<32x128xf32>
    %c1_i32 = arith.constant 1 : i32
    %17 = vector.broadcast %c1_i32 : i32 to vector<32x128xi32>
    %18 = arith.cmpi eq, %5, %17 : vector<32x128xi32>
    %cst_13 = arith.constant 1.00000012 : f32
    %cst_14 = arith.constant 1.000000e-07 : f32
    %19 = vector.broadcast %cst_13 : f32 to vector<32x128xf32>
    %20 = vector.broadcast %cst_14 : f32 to vector<32x128xf32>
    %21 = arith.select %18, %19, %20 : vector<32x128xi1>, vector<32x128xf32>
    %22 = arith.subf %16, %21 : vector<32x128xf32>
    %23 = arith.mulf %22, %22 : vector<32x128xf32>
    %24 = arith.addf %14, %23 : vector<32x128xf32>
    %c0_15 = arith.constant 0 : index
    %c2 = arith.constant 2 : index
    %c0_16 = arith.constant 0 : index
    %c0_17 = arith.constant 0 : index
    %25 = vector.load %arg3[%c0_15, %c2, %c0_16, %c0_17] : memref<1x4x32x128xf32, #tpu.memory_space<vmem>>, vector<1x1x32x128xf32>
    %26 = vector.shape_cast %25 : vector<1x1x32x128xf32> to vector<32x128xf32>
    %c2_i32 = arith.constant 2 : i32
    %27 = vector.broadcast %c2_i32 : i32 to vector<32x128xi32>
    %28 = arith.cmpi eq, %5, %27 : vector<32x128xi32>
    %cst_18 = arith.constant 1.00000012 : f32
    %cst_19 = arith.constant 1.000000e-07 : f32
    %29 = vector.broadcast %cst_18 : f32 to vector<32x128xf32>
    %30 = vector.broadcast %cst_19 : f32 to vector<32x128xf32>
    %31 = arith.select %28, %29, %30 : vector<32x128xi1>, vector<32x128xf32>
    %32 = arith.subf %26, %31 : vector<32x128xf32>
    %33 = arith.mulf %32, %32 : vector<32x128xf32>
    %34 = arith.addf %24, %33 : vector<32x128xf32>
    %c0_20 = arith.constant 0 : index
    %c3 = arith.constant 3 : index
    %c0_21 = arith.constant 0 : index
    %c0_22 = arith.constant 0 : index
    %35 = vector.load %arg3[%c0_20, %c3, %c0_21, %c0_22] : memref<1x4x32x128xf32, #tpu.memory_space<vmem>>, vector<1x1x32x128xf32>
    %36 = vector.shape_cast %35 : vector<1x1x32x128xf32> to vector<32x128xf32>
    %c3_i32 = arith.constant 3 : i32
    %37 = vector.broadcast %c3_i32 : i32 to vector<32x128xi32>
    %38 = arith.cmpi eq, %5, %37 : vector<32x128xi32>
    %cst_23 = arith.constant 1.00000012 : f32
    %cst_24 = arith.constant 1.000000e-07 : f32
    %39 = vector.broadcast %cst_23 : f32 to vector<32x128xf32>
    %40 = vector.broadcast %cst_24 : f32 to vector<32x128xf32>
    %41 = arith.select %38, %39, %40 : vector<32x128xi1>, vector<32x128xf32>
    %42 = arith.subf %36, %41 : vector<32x128xf32>
    %43 = arith.mulf %42, %42 : vector<32x128xf32>
    %44 = arith.addf %34, %43 : vector<32x128xf32>
    %c0_25 = arith.constant 0 : index
    %c0_26 = arith.constant 0 : index
    %c0_27 = arith.constant 0 : index
    %c0_28 = arith.constant 0 : index
    %45 = vector.load %arg5[%c0_25, %c0_26, %c0_27, %c0_28] : memref<1x1x8x128xf32, #tpu.memory_space<vmem>>, vector<1x1x8x128xf32>
    %46 = vector.shape_cast %45 : vector<1x1x8x128xf32> to vector<8x128xf32>
    %47 = vector.shape_cast %44 : vector<32x128xf32> to vector<4x8x128xf32>
    %cst_29 = arith.constant dense<0.000000e+00> : vector<8x128xf32>
    %48 = vector.multi_reduction <add>, %47, %cst_29 [0] : vector<4x8x128xf32> to vector<8x128xf32>
    %49 = arith.addf %46, %48 : vector<8x128xf32>
    %c0_30 = arith.constant 0 : index
    %c0_31 = arith.constant 0 : index
    %c0_32 = arith.constant 0 : index
    %c0_33 = arith.constant 0 : index
    %50 = vector.load %arg5[%c0_30, %c0_31, %c0_32, %c0_33] : memref<1x1x8x128xf32, #tpu.memory_space<vmem>>, vector<1x1x8x128xf32>
    %51 = vector.shape_cast %50 : vector<1x1x8x128xf32> to vector<8x128xf32>
    %52 = vector.shape_cast %49 : vector<8x128xf32> to vector<1x1x8x128xf32>
    tpu.vector_store %arg5[%c0_30, %c0_31, %c0_32, %c0_33], %52 {strides = array<i32>} : memref<1x1x8x128xf32, #tpu.memory_space<vmem>>, vector<1x1x8x128xf32>,
    return
  }
  func.func @transform_0(%arg0: i32, %arg1: i32, %arg2: i32) -> (i32, i32, i32, i32) {
    %c1_i32 = arith.constant 1 : i32
    %0 = arith.muli %arg1, %c1_i32 : i32
    %1 = arith.addi %0, %arg2 : i32
    %c0_i32 = arith.constant 0 : i32
    %2 = arith.minsi %1, %c0_i32 : i32
    %c0_i32_0 = arith.constant 0 : i32
    %c0_i32_1 = arith.constant 0 : i32
    %c0_i32_2 = arith.constant 0 : i32
    return %arg0, %c0_i32_0, %2, %c0_i32_1 : i32, i32, i32, i32
  }
  func.func @transform_1(%arg0: i32, %arg1: i32, %arg2: i32) -> (i32, i32, i32, i32) {
    %c1_i32 = arith.constant 1 : i32
    %0 = arith.muli %arg1, %c1_i32 : i32
    %1 = arith.addi %0, %arg2 : i32
    %c0_i32 = arith.constant 0 : i32
    %2 = arith.minsi %1, %c0_i32 : i32
    %c0_i32_0 = arith.constant 0 : i32
    %c0_i32_1 = arith.constant 0 : i32
    %c0_i32_2 = arith.constant 0 : i32
    return %arg0, %c0_i32_0, %2, %c0_i32_1 : i32, i32, i32, i32
  }
  func.func @transform_2(%arg0: i32, %arg1: i32, %arg2: i32) -> (i32, i32, i32, i32) {
    %c0_i32 = arith.constant 0 : i32
    %c0_i32_0 = arith.constant 0 : i32
    %c0_i32_1 = arith.constant 0 : i32
    return %arg0, %arg1, %c0_i32, %c0_i32_0 : i32, i32, i32, i32
  }
}

</mosaic_0001>

<llo_original>
// kernel: tpu_custom_call.1
$region0: #{tpu_custom_call.1}
  #allocation0 [shape = 'u32[]', space=smem, size = 0x4, offset = 0x4, fixed_abs, tag = 'smem constant byte address 0x4 - core index']
  #allocation1 [shape = 'u32[144,128]{1,0:T(1,128)}', space=vmem, size = 0x12000, scoped, tag = 'internal scratch']
  %s0 = inlined_call_operand.hbm [shape: f32[2,4,32,128], index: 0, kind: input, shape index: {}]
  %s1 = inlined_call_operand.hbm [shape: s8[2,1,32,128], index: 1, kind: input, shape index: {}]
  %s2 = inlined_call_operand.hbm [shape: f32[2,1,8,128], index: 2, kind: output, shape index: {}]
  %s3 = sld [smem:[#allocation0]]
  $region53: #{tpu_custom_call.1} parent=0
    _
  %s5 = ssub.s32 1, %s3
  %s6 = scalar_select 0, %s5, %s3
  $region1: #{tpu_custom_call.1} parent=0
    #allocation2 [shape = 'u8[131072]{0}', space=vmem, size = 0x20000, scoped, tag = 'input window, operand 0']
    #allocation3 [shape = 's32[2]{0}', space=sflag, size = 0x8, scoped, tag = 'scoped memory for tpu_custom_call.1']
    #allocation4 [shape = 's32[2]{0}', space=sflag, size = 0x8, scoped, tag = 'scoped memory for tpu_custom_call.1']
    #allocation5 [shape = 'u8[8192]{0}', space=vmem, size = 0x2000, scoped, tag = 'input window, operand 1']
    #allocation6 [shape = 's32[2]{0}', space=sflag, size = 0x8, scoped, tag = 'scoped memory for tpu_custom_call.1']
    #allocation7 [shape = 'u8[8192]{0}', space=vmem, size = 0x2000, scoped, tag = 'output window, operand 0']
    %7 = vsyncpa [#allocation3], 0
    %s8 = scalar_lea.sflag [#allocation3], 1
    %9 = vsyncpa %s8, 0
    %10 = vsyncpa [#allocation6], 0
    %s11 = scalar_lea.sflag [#allocation6], 1
    %12 = vsyncpa %s11, 0
    %13 = vsyncpa [#allocation4], 0
    %s14 = scalar_lea.sflag [#allocation4], 1
    %15 = vsyncpa %s14, 0
    loop: start=0, step=1, limit=4
    $region2: #{tpu_custom_call.1} parent=1 // loop_pre_header
      _
    $region3: #{tpu_custom_call.1} parent=1 // loop_header
      %s17 = sphi 0, %s21
      %p18 = scmp.ge.s32.totalorder %s17, 4
      %s24 = sphi 0, %s43
      %s25 = sphi 0, %s39
      %s26 = sphi 0, %s35
      %s27 = sphi 0, %s24
      %s28 = sphi 0, %s25
      %s29 = sphi 0, %s26
      %s30 = sphi 0, %s27
      %s31 = sphi 0, %s28
      %s32 = sphi 0, %s29
      %s54 = sphi 0, %s56
      %s57 = sphi 0, %s54
      %s58 = sphi 0, %s57
      %s74 = sphi 0, %s58
      %s88 = sphi 0, %s90
      %s91 = sphi 0, %s88
      %s92 = sphi 0, %s91
      %s108 = sphi 0, %s92
      %s116 = sphi 0, %s118
      %s119 = sphi 0, %s116
      %s120 = sphi 0, %s119
      %s136 = sphi 0, %s120
    $region4: #{tpu_custom_call.1} parent=1 // loop_header_branch
      %20 = sbr.rel (%p18) target = $region8
    $region5: #{tpu_custom_call.1} parent=1 // loop_body
      %s22 = ssub.s32 %s17, 1
      %s23 = ssub.s32 %s17, 2
      %s33 = sadd.s32 1, %s26
      %p34 = scmp.ge.s32.totalorder %s33, 1
      %s35 = scalar_select %p34, 0, %s33
      %s36 = sadd.s32 1, %s25
      %s37 = scalar_select %p34, %s36, %s25
      %p38 = scmp.ge.s32.totalorder %s37, 1
      %s39 = scalar_select %p38, 0, %s37
      %s40 = sadd.s32 1, %s24
      %s41 = scalar_select %p38, %s40, %s24
      %p42 = scmp.ge.s32.totalorder %s41, 2
      %s43 = scalar_select %p42, 0, %s41
      %s44 = sadd.s32 %s25, %s26
      %p45 = scmp.lt.s32.totalorder %s44, 0
      %s46 = scalar_select %p45, %s44, 0
      %s47 = sadd.s32 %s39, %s35
      %p48 = scmp.lt.s32.totalorder %s47, 0
      %s49 = scalar_select %p48, %s47, 0
      %s50 = ssub.s32 %s24, %s43
      %s51 = ssub.s32 %s46, %s49
      %s52 = sor.u32 %s50, %s51
      %p53 = scmp.eq.s32.totalorder %s52, 0
      %s55 = sadd.s32 %s54, 1
      %s56 = scalar_select %p53, %s54, %s55
      %p59 = pneg %p53
      %p60 = scmp.eq.s32.totalorder %s17, 1
      %p61 = por %p59, %p60
      %p62 = scmp.ne.s32.totalorder %s54, %s57
      %p63 = scmp.eq.s32.totalorder %s17, 0
      %p64 = por %p62, %p63
      %p65 = scmp.ne.s32.totalorder %s54, %s57
      %p66 = scmp.eq.s32.totalorder %s22, 1
      %p67 = por %p65, %p66
      %p68 = scmp.ne.s32.totalorder %s57, %s58
      %p69 = scmp.eq.s32.totalorder %s22, 0
      %p70 = por %p68, %p69
      %p71 = scmp.ne.s32.totalorder %s57, %s58
      %p72 = scmp.eq.s32.totalorder %s23, 1
      %p73 = por %p71, %p72
      %p75 = scmp.ne.s32.totalorder %s58, %s74
      %p76 = scmp.eq.s32.totalorder %s23, 0
      %p77 = por %p75, %p76
      %s78 = sadd.s32 %s25, %s26
      %p79 = scmp.lt.s32.totalorder %s78, 0
      %s80 = scalar_select %p79, %s78, 0
      %s81 = sadd.s32 %s39, %s35
      %p82 = scmp.lt.s32.totalorder %s81, 0
      %s83 = scalar_select %p82, %s81, 0
      %s84 = ssub.s32 %s24, %s43
      %s85 = ssub.s32 %s80, %s83
      %s86 = sor.u32 %s84, %s85
      %p87 = scmp.eq.s32.totalorder %s86, 0
      %s89 = sadd.s32 %s88, 1
      %s90 = scalar_select %p87, %s88, %s89
      %p93 = pneg %p87
      %p94 = scmp.eq.s32.totalorder %s17, 1
      %p95 = por %p93, %p94
      %p96 = scmp.ne.s32.totalorder %s88, %s91
      %p97 = scmp.eq.s32.totalorder %s17, 0
      %p98 = por %p96, %p97
      %p99 = scmp.ne.s32.totalorder %s88, %s91
      %p100 = scmp.eq.s32.totalorder %s22, 1
      %p101 = por %p99, %p100
      %p102 = scmp.ne.s32.totalorder %s91, %s92
      %p103 = scmp.eq.s32.totalorder %s22, 0
      %p104 = por %p102, %p103
      %p105 = scmp.ne.s32.totalorder %s91, %s92
      %p106 = scmp.eq.s32.totalorder %s23, 1
      %p107 = por %p105, %p106
      %p109 = scmp.ne.s32.totalorder %s92, %s108
      %p110 = scmp.eq.s32.totalorder %s23, 0
      %p111 = por %p109, %p110
      %s112 = ssub.s32 %s24, %s43
      %s113 = ssub.s32 %s25, %s39
      %s114 = sor.u32 %s112, %s113
      %p115 = scmp.eq.s32.totalorder %s114, 0
      %s117 = sadd.s32 %s116, 1
      %s118 = scalar_select %p115, %s116, %s117
      %p121 = pneg %p115
      %p122 = scmp.eq.s32.totalorder %s17, 1
      %p123 = por %p121, %p122
      %p124 = scmp.ne.s32.totalorder %s116, %s119
      %p125 = scmp.eq.s32.totalorder %s17, 0
      %p126 = por %p124, %p125
      %p127 = scmp.ne.s32.totalorder %s116, %s119
      %p128 = scmp.eq.s32.totalorder %s22, 1
      %p129 = por %p127, %p128
      %p130 = scmp.ne.s32.totalorder %s119, %s120
      %p131 = scmp.eq.s32.totalorder %s22, 0
      %p132 = por %p130, %p131
      %p133 = scmp.ne.s32.totalorder %s119, %s120
      %p134 = scmp.eq.s32.totalorder %s23, 1
      %p135 = por %p133, %p134
      %p137 = scmp.ne.s32.totalorder %s120, %s136
      %p138 = scmp.eq.s32.totalorder %s23, 0
      %p139 = por %p137, %p138
      %p140 = scmp.le.s32.totalorder 1, %s17
      %p141 = scmp.lt.s32.totalorder %s17, 3
      %p142 = pnand %p140, %p141
      %p143 = pneg %p142
      // Predicated region
      $region9: #{tpu_custom_call.1} parent=5 // pred_check
        _
      $region10: #{tpu_custom_call.1} parent=5 // pred_check_branch
        %145 = sbr.rel (%p142) target = $region12
      $region11: #{tpu_custom_call.1} parent=5 // pred_region
        %s146 = ssub.s32 %s17, 1
      $region12: #{tpu_custom_call.1} parent=5 // pred_fallthru
        _
      %p147 = scmp.lt.s32.totalorder %s17, 2
      // Predicated region
      $region13: #{tpu_custom_call.1} parent=5 // pred_check
        %p148 = pneg %p147
      $region14: #{tpu_custom_call.1} parent=5 // pred_check_branch
        %150 = sbr.rel (%p148) target = $region16
      $region15: #{tpu_custom_call.1} parent=5 // pred_region
        // Predicated region
        $region17: #{tpu_custom_call.1} parent=15 // pred_check
          %p151 = pneg %p64
        $region18: #{tpu_custom_call.1} parent=15 // pred_check_branch
          %153 = sbr.rel (%p151) target = $region20
        $region19: #{tpu_custom_call.1} parent=15 // pred_region
          %s154 = sand.u32 %s54, 1
          %s155 = scalar_lea.sflag [#allocation3], %s154
          %s156 = sand.u32 %s54, 1
          %s157 = smul.addr %s156, 128
          %s158 = scalar_lea.vmem [#allocation2], %s157
          %s159 = sadd.s32 %s25, %s26
          %p160 = scmp.lt.s32.totalorder %s159, 0
          %s161 = scalar_select %p160, %s159, 0
          %s162 = smul.u32 4, %s161
          %s164 = ssub.s32 2048, 2048
          %165 = vsyncadd %s155, %s164
          %s166 = smul.addr %s24, 16
          %s167 = sadd.s32 %s162, %s166
          %s168 = smul.addr %s167, 128
          %s169 = scalar_lea.hbm %s0, %s168
          %s170 = sshll.u32 %s158, 4
          %s171 = int_to_ptr.vmem [resolvable:$true] %s170
          %176 = dma.hbm_to_vmem [thread:$0]  %s169, 2048, %s171, %s155, 128, 128, 8
        $region20: #{tpu_custom_call.1} parent=15 // pred_fallthru
          _
        // Predicated region
        $region21: #{tpu_custom_call.1} parent=15 // pred_check
          %p177 = pneg %p98
        $region22: #{tpu_custom_call.1} parent=15 // pred_check_branch
          %179 = sbr.rel (%p177) target = $region24
        $region23: #{tpu_custom_call.1} parent=15 // pred_region
          %s180 = sand.u32 %s88, 1
          %s181 = scalar_lea.sflag [#allocation6], %s180
          %s182 = sand.u32 %s88, 1
          %s183 = smul.addr %s182, 8
          %s184 = scalar_lea.vmem [#allocation5], %s183
          %s185 = sadd.s32 %s25, %s26
          %p186 = scmp.lt.s32.totalorder %s185, 0
          %s187 = scalar_select %p186, %s185, 0
          %s189 = ssub.s32 128, 128
          %190 = vsyncadd %s181, %s189
          %s191 = sadd.s32 %s187, %s24
          %s192 = smul.addr %s191, 128
          %s193 = scalar_lea.hbm %s1, %s192
          %s195 = sshll.u32 %s184, 4
          %s196 = int_to_ptr.vmem [resolvable:$true] %s195
          %198 = dma.hbm_to_vmem [thread:$0]  %s193, 128, %s196, %s181
        $region24: #{tpu_custom_call.1} parent=15 // pred_fallthru
          _
      $region16: #{tpu_custom_call.1} parent=5 // pred_fallthru
        _
      %p199 = scmp.le.s32.totalorder 1, %s17
      %p200 = scmp.lt.s32.totalorder %s17, 3
      %p201 = pnand %p199, %p200
      %p202 = pneg %p201
      // Predicated region
      $region25: #{tpu_custom_call.1} parent=5 // pred_check
        _
      $region26: #{tpu_custom_call.1} parent=5 // pred_check_branch
        %204 = sbr.rel (%p201) target = $region28
      $region27: #{tpu_custom_call.1} parent=5 // pred_region
        %s205 = ssub.s32 %s17, 1
        %s206 = sand.u32 %s57, 1
        %s207 = scalar_lea.sflag [#allocation3], %s206
        %s208 = sand.u32 %s57, 1
        %s209 = smul.addr %s208, 128
        %s210 = scalar_lea.vmem [#allocation2], %s209
        // Predicated region
        $region29: #{tpu_custom_call.1} parent=27 // pred_check
          %p211 = pneg %p70
        $region30: #{tpu_custom_call.1} parent=27 // pred_check_branch
          %213 = sbr.rel (%p211) target = $region32
        $region31: #{tpu_custom_call.1} parent=27 // pred_region
          %214 = dma.done %s207, 2048
        $region32: #{tpu_custom_call.1} parent=27 // pred_fallthru
          _
        %s215 = sand.u32 %s91, 1
        %s216 = scalar_lea.sflag [#allocation6], %s215
        %s217 = sand.u32 %s91, 1
        %s218 = smul.addr %s217, 8
        %s219 = scalar_lea.vmem [#allocation5], %s218
        // Predicated region
        $region33: #{tpu_custom_call.1} parent=27 // pred_check
          %p220 = pneg %p104
        $region34: #{tpu_custom_call.1} parent=27 // pred_check_branch
          %222 = sbr.rel (%p220) target = $region36
        $region35: #{tpu_custom_call.1} parent=27 // pred_region
          %223 = dma.done %s216, 128
        $region36: #{tpu_custom_call.1} parent=27 // pred_fallthru
          _
        %s224 = sand.u32 %s57, 1
        %s225 = scalar_lea.sflag [#allocation3], %s224
        %s226 = sand.u32 %s57, 1
        %s227 = smul.addr %s226, 128
        %s228 = scalar_lea.vmem [#allocation2], %s227
        %p229 = pneg %p70
        %p230 = pneg %p67
        %s231 = sand.u32 %s91, 1
        %s232 = scalar_lea.sflag [#allocation6], %s231
        %s233 = sand.u32 %s91, 1
        %s234 = smul.addr %s233, 8
        %s235 = scalar_lea.vmem [#allocation5], %s234
        %p236 = pneg %p104
        %p237 = pneg %p101
        %p238 = pneg %p132
        %p239 = pneg %p129
        %s240 = sand.u32 %s119, 1
        %s241 = scalar_lea.sflag [#allocation4], %s240
        %s242 = sand.u32 %s119, 1
        %s243 = smul.addr %s242, 8
        %s244 = scalar_lea.vmem [#allocation7], %s243
        %s245 = sadd.s32 %s28, %s29
        %p246 = scmp.lt.s32.totalorder %s245, 0
        %s247 = scalar_select %p246, %s245, 0
        %s248 = smul.u32 4, %s247
        %s249 = sadd.s32 %s28, %s29
        %p250 = scmp.lt.s32.totalorder %s249, 0
        %s251 = scalar_select %p250, %s249, 0
        %p252 = scmp.eq.s32.totalorder %s29, 0
        // Predicated region
        $region37: #{tpu_custom_call.1} parent=27 // pred_check
          %p253 = pneg %p252
        $region38: #{tpu_custom_call.1} parent=27 // pred_check_branch
          %255 = sbr.rel (%p253) target = $region40
        $region39: #{tpu_custom_call.1} parent=27 // pred_region
          %256 = vst [vmem:[%s244] sm:$0xff] 0.0
        $region40: #{tpu_custom_call.1} parent=27 // pred_fallthru
          _
        %v257 = vld [vmem:[%s219] sm:$0xff]
        %v258 = vunpack.c.0.s8 %v257
        %v259 = vunpack.c.1.s8 %v257
        %v260 = vunpack.c.2.s8 %v257
        %v261 = vunpack.c.3.s8 %v257
        %v262 = vld [vmem:[%s210] sm:$0xff]
        %v263 = vld [vmem:[%s210 + $0x8] sm:$0xff]
        %v264 = vld [vmem:[%s210 + $0x10] sm:$0xff]
        %v265 = vld [vmem:[%s210 + $0x18] sm:$0xff]
        %vm266 = vcmp.eq.s32.totalorder %v258, 0
        %vm267 = vcmp.eq.s32.totalorder %v259, 0
        %vm268 = vcmp.eq.s32.totalorder %v260, 0
        %vm269 = vcmp.eq.s32.totalorder %v261, 0
        %v270 = vsel %vm266, 1.0000001, 1e-07
        %v271 = vsel %vm267, 1.0000001, 1e-07
        %v272 = vsel %vm268, 1.0000001, 1e-07
        %v273 = vsel %vm269, 1.0000001, 1e-07
        %v274 = vsub.f32 %v262, %v270
        %v275 = vsub.f32 %v263, %v271
        %v276 = vsub.f32 %v264, %v272
        %v277 = vsub.f32 %v265, %v273
        %v278 = vmul.f32 %v274, %v274
        %v279 = vmul.f32 %v275, %v275
        %v280 = vmul.f32 %v276, %v276
        %v281 = vmul.f32 %v277, %v277
        %s282 = scalar_lea.vmem %s210, 32 [#allocation2]
        %v283 = vld [vmem:[%s282] sm:$0xff]
        %v284 = vld [vmem:[%s282 + $0x8] sm:$0xff]
        %v285 = vld [vmem:[%s282 + $0x10] sm:$0xff]
        %v286 = vld [vmem:[%s282 + $0x18] sm:$0xff]
        %vm287 = vcmp.eq.s32.totalorder %v258, 1
        %vm288 = vcmp.eq.s32.totalorder %v259, 1
        %vm289 = vcmp.eq.s32.totalorder %v260, 1
        %vm290 = vcmp.eq.s32.totalorder %v261, 1
        %v291 = vsel %vm287, 1.0000001, 1e-07
        %v292 = vsel %vm288, 1.0000001, 1e-07
        %v293 = vsel %vm289, 1.0000001, 1e-07
        %v294 = vsel %vm290, 1.0000001, 1e-07
        %v295 = vsub.f32 %v283, %v291
        %v296 = vsub.f32 %v284, %v292
        %v297 = vsub.f32 %v285, %v293
        %v298 = vsub.f32 %v286, %v294
        %v299 = vmul.f32 %v295, %v295
        %v300 = vmul.f32 %v296, %v296
        %v301 = vmul.f32 %v297, %v297
        %v302 = vmul.f32 %v298, %v298
        %v303 = vadd.f32 %v278, %v299
        %v304 = vadd.f32 %v279, %v300
        %v305 = vadd.f32 %v280, %v301
        %v306 = vadd.f32 %v281, %v302
        %s307 = scalar_lea.vmem %s210, 64 [#allocation2]
        %v308 = vld [vmem:[%s307] sm:$0xff]
        %v309 = vld [vmem:[%s307 + $0x8] sm:$0xff]
        %v310 = vld [vmem:[%s307 + $0x10] sm:$0xff]
        %v311 = vld [vmem:[%s307 + $0x18] sm:$0xff]
        %vm312 = vcmp.eq.s32.totalorder %v258, 2
        %vm313 = vcmp.eq.s32.totalorder %v259, 2
        %vm314 = vcmp.eq.s32.totalorder %v260, 2
        %vm315 = vcmp.eq.s32.totalorder %v261, 2
        %v316 = vsel %vm312, 1.0000001, 1e-07
        %v317 = vsel %vm313, 1.0000001, 1e-07
        %v318 = vsel %vm314, 1.0000001, 1e-07
        %v319 = vsel %vm315, 1.0000001, 1e-07
        %v320 = vsub.f32 %v308, %v316
        %v321 = vsub.f32 %v309, %v317
        %v322 = vsub.f32 %v310, %v318
        %v323 = vsub.f32 %v311, %v319
        %v324 = vmul.f32 %v320, %v320
        %v325 = vmul.f32 %v321, %v321
        %v326 = vmul.f32 %v322, %v322
        %v327 = vmul.f32 %v323, %v323
        %v328 = vadd.f32 %v303, %v324
        %v329 = vadd.f32 %v304, %v325
        %v330 = vadd.f32 %v305, %v326
        %v331 = vadd.f32 %v306, %v327
        %s332 = scalar_lea.vmem %s210, 96 [#allocation2]
        %v333 = vld [vmem:[%s332] sm:$0xff]
        %v334 = vld [vmem:[%s332 + $0x8] sm:$0xff]
        %v335 = vld [vmem:[%s332 + $0x10] sm:$0xff]
        %v336 = vld [vmem:[%s332 + $0x18] sm:$0xff]
        %vm337 = vcmp.eq.s32.totalorder %v258, 3
        %vm338 = vcmp.eq.s32.totalorder %v259, 3
        %vm339 = vcmp.eq.s32.totalorder %v260, 3
        %vm340 = vcmp.eq.s32.totalorder %v261, 3
        %v341 = vsel %vm337, 1.0000001, 1e-07
        %v342 = vsel %vm338, 1.0000001, 1e-07
        %v343 = vsel %vm339, 1.0000001, 1e-07
        %v344 = vsel %vm340, 1.0000001, 1e-07
        %v345 = vsub.f32 %v333, %v341
        %v346 = vsub.f32 %v334, %v342
        %v347 = vsub.f32 %v335, %v343
        %v348 = vsub.f32 %v336, %v344
        %v349 = vmul.f32 %v345, %v345
        %v350 = vmul.f32 %v346, %v346
        %v351 = vmul.f32 %v347, %v347
        %v352 = vmul.f32 %v348, %v348
        %v353 = vadd.f32 %v328, %v349
        %v354 = vadd.f32 %v329, %v350
        %v355 = vadd.f32 %v330, %v351
        %v356 = vadd.f32 %v331, %v352
        %v357 = vld [vmem:[%s244] sm:$0xff]
        %v358 = vadd.f32 %v353, %v354
        %v359 = vadd.f32 %v358, %v355
        %v360 = vadd.f32 %v359, %v356
        %v361 = vadd.f32 %v357, %v360
        %362 = vst [vmem:[%s244] sm:$0xff] %v361
        %s363 = sand.u32 %s119, 1
        %s364 = scalar_lea.sflag [#allocation4], %s363
        %s365 = sand.u32 %s119, 1
        %s366 = smul.addr %s365, 8
        %s367 = scalar_lea.vmem [#allocation7], %s366
        // Predicated region
        $region41: #{tpu_custom_call.1} parent=27 // pred_check
          %p368 = pneg %p129
        $region42: #{tpu_custom_call.1} parent=27 // pred_check_branch
          %370 = sbr.rel (%p368) target = $region44
        $region43: #{tpu_custom_call.1} parent=27 // pred_region
          %s372 = ssub.s32 128, 128
          %373 = vsyncadd %s364, %s372
          %s374 = sadd.s32 %s28, %s27
          %s375 = smul.addr %s374, 128
          %s376 = scalar_lea.hbm %s2, %s375
          %s378 = sshll.u32 %s367, 4
          %s379 = int_to_ptr.vmem [resolvable:$true] %s378
          %381 = dma.vmem_to_hbm [thread:$0]  %s379, 128, %s376, %s364
        $region44: #{tpu_custom_call.1} parent=27 // pred_fallthru
          _
      $region28: #{tpu_custom_call.1} parent=5 // pred_fallthru
        _
      %p382 = scmp.le.s32.totalorder 2, %s17
      // Predicated region
      $region45: #{tpu_custom_call.1} parent=5 // pred_check
        %p383 = pneg %p382
      $region46: #{tpu_custom_call.1} parent=5 // pred_check_branch
        %385 = sbr.rel (%p383) target = $region48
      $region47: #{tpu_custom_call.1} parent=5 // pred_region
        %s386 = ssub.s32 %s17, 2
        // Predicated region
        $region49: #{tpu_custom_call.1} parent=47 // pred_check
          %p387 = pneg %p135
        $region50: #{tpu_custom_call.1} parent=47 // pred_check_branch
          %389 = sbr.rel (%p387) target = $region52
        $region51: #{tpu_custom_call.1} parent=47 // pred_region
          %s390 = sand.u32 %s120, 1
          %s391 = scalar_lea.sflag [#allocation4], %s390
          %s392 = sand.u32 %s120, 1
          %s393 = smul.addr %s392, 8
          %s394 = scalar_lea.vmem [#allocation7], %s393
          %395 = dma.done %s391, 128
        $region52: #{tpu_custom_call.1} parent=47 // pred_fallthru
          _
      $region48: #{tpu_custom_call.1} parent=5 // pred_fallthru
        _
    $region6: #{tpu_custom_call.1} parent=1 // loop_footer
      %s21 = sadd.s32 1, %s17
    $region7: #{tpu_custom_call.1} parent=1 // loop_footer_branch
      %16 = sbr.rel target = $region3
    $region8: #{tpu_custom_call.1} parent=1 // loop_exit
      _
    %396 = vsyncpa [#allocation3], 1
    %s397 = scalar_lea.sflag [#allocation3], 1
    %398 = vsyncpa %s397, 1
    %399 = vsyncpa [#allocation6], 1
    %s400 = scalar_lea.sflag [#allocation6], 1
    %401 = vsyncpa %s400, 1
    %402 = vsyncpa [#allocation4], 1
    %s403 = scalar_lea.sflag [#allocation4], 1
    %404 = vsyncpa %s403, 1

</llo_original>
